<compile_context>
chip_gen: v5e
topology: v5e:2x2
jax: 0.10.0
libtpu: 0.0.40
codegen_flags: <defaults>
</compile_context>

<pallas_src>
import functools

import numpy as np
import jax
import jax.numpy as jnp
from jax.experimental import pallas as pl
from jax.experimental.pallas import tpu as pltpu


def _round_up(x, m):
    return (x + m - 1) // m * m


# ----------------------------------------------------------------------------
# Pallas kernel 1: matmul + bias + (optional) ReLU  (used by all convs)
# ----------------------------------------------------------------------------
def _mm_fullk_kernel(x_ref, w_ref, b_ref, o_ref, *, activation):
    # Single-K-block kernel: one dot per output tile, epilogue fused.
    y = jnp.dot(x_ref[...], w_ref[...], preferred_element_type=jnp.float32)
    n_out = o_ref.shape[-1]
    if y.shape[-1] != n_out:            # narrow-N case: weight was lane-widened
        y = y[:, :n_out]
    y = y + b_ref[...]
    if activation == "relu":
        y = jnp.maximum(y, 0.0)
    o_ref[...] = y.astype(o_ref.dtype)


def _mm_acc_kernel(x_ref, w_ref, b_ref, o_ref, acc_ref, *, activation):
    # K-blocked accumulation (only used for very large K).
    k = pl.program_id(2)

    @pl.when(k == 0)
    def _():
        acc_ref[...] = jnp.zeros_like(acc_ref)

    acc_ref[...] += jnp.dot(x_ref[...], w_ref[...],
                            preferred_element_type=jnp.float32)

    @pl.when(k == pl.num_programs(2) - 1)
    def _():
        y = acc_ref[...] + b_ref[...]
        if activation == "relu":
            y = jnp.maximum(y, 0.0)
        o_ref[...] = y.astype(o_ref.dtype)


@functools.partial(jax.jit, static_argnames=("activation",))
def matmul_bias_act(x, w, b, activation="linear"):
    """out[M,N] = act(x[M,K] @ w[K,N] + b[N]) on the MXU (bf16 in, f32 acc)."""
    M, K = x.shape
    _, N = w.shape
    x = x.astype(jnp.bfloat16)
    w = w.astype(jnp.bfloat16)
    b = b.astype(jnp.float32).reshape(1, N)

    # Pad the contraction dim only to a sublane multiple when needed
    # (tiny: 27->32 for conv1_1, 5->8 for score_final) -- numerically exact.
    if K % 8 != 0:
        Kp = _round_up(K, 8)
        x = jnp.pad(x, ((0, 0), (0, Kp - K)))
        w = jnp.pad(w, ((0, Kp - K), (0, 0)))
        K = Kp

    # Output / weight tile width: 256-aligned for big layers, full-N for small
    # layers so no N padding (and no 128x-wide HBM writes for Cout=1 convs).
    if N % 256 == 0:
        tn = 256
    elif N % 128 == 0:
        tn = 128
    else:
        tn = N
    grid_n = N // tn

    # Very narrow outputs (score convs / bilinear deconv filters): widen only
    # the in-VMEM weight operand to 128 lanes for a conventional MXU dot shape;
    # the HBM output stays at its true (M, N) size (sliced in-kernel).
    if tn < 32:
        w_op = jnp.pad(w, ((0, 0), (0, 128 - N)))
        tw = 128
    else:
        w_op = w
        tw = tn

    tm = 256 if M >= 256 else M         # ragged last M block is masked by Pallas

    if K <= 6144:
        grid = (pl.cdiv(M, tm), grid_n)
        return pl.pallas_call(
            functools.partial(_mm_fullk_kernel, activation=activation),
            out_shape=jax.ShapeDtypeStruct((M, N), jnp.float32),
            grid_spec=pltpu.PrefetchScalarGridSpec(
                num_scalar_prefetch=0,
                grid=grid,
                in_specs=[
                    pl.BlockSpec((tm, K), lambda i, j: (i, 0)),
                    pl.BlockSpec((K, tw), lambda i, j: (0, j)),
                    pl.BlockSpec((1, tn), lambda i, j: (0, j)),
                ],
                out_specs=pl.BlockSpec((tm, tn), lambda i, j: (i, j)),
            ),
            compiler_params=pltpu.CompilerParams(
                dimension_semantics=("parallel", "parallel")),
        )(x, w_op, b)

    # Fallback: K-blocked accumulation for very large K (e.g. encoder4 conv2).
    tk = 512
    Kp = _round_up(K, tk)
    xp = jnp.pad(x, ((0, 0), (0, Kp - K)))
    wp = jnp.pad(w_op, ((0, Kp - K), (0, 0)))
    grid = (pl.cdiv(M, tm), grid_n, Kp // tk)
    return pl.pallas_call(
        functools.partial(_mm_acc_kernel, activation=activation),
        out_shape=jax.ShapeDtypeStruct((M, N), jnp.float32),
        grid_spec=pltpu.PrefetchScalarGridSpec(
            num_scalar_prefetch=0,
            grid=grid,
            in_specs=[
                pl.BlockSpec((tm, tk), lambda i, j, k: (i, k)),
                pl.BlockSpec((tk, tw), lambda i, j, k: (k, j)),
                pl.BlockSpec((1, tn), lambda i, j, k: (0, j)),
            ],
            out_specs=pl.BlockSpec((tm, tn), lambda i, j, k: (i, j)),
            scratch_shapes=[pltpu.VMEM((tm, tn), jnp.float32)],
        ),
        compiler_params=pltpu.CompilerParams(
            dimension_semantics=("parallel", "parallel", "arbitrary")),
    )(xp, wp, b)


# ----------------------------------------------------------------------------
# conv / pool / resize wrappers (im2col glue in JAX, matmul in Pallas)
# ----------------------------------------------------------------------------
def conv2d(x, w, b=None, stride=1, padding=0, activation="linear"):
    # x: (N,H,W,Cin)   w: (KH,KW,Cin,Cout)   b: (Cout,) or None
    N, H, W, Cin = x.shape
    KH, KW, _, Cout = w.shape
    if b is None:
        b = jnp.zeros((Cout,), jnp.float32)
    x = x.astype(jnp.bfloat16)           # halve im2col / pad traffic
    if padding > 0:
        x = jnp.pad(x, ((0, 0), (padding, padding), (padding, padding), (0, 0)))
    Hp, Wp = H + 2 * padding, W + 2 * padding
    Ho = (Hp - KH) // stride + 1
    Wo = (Wp - KW) // stride + 1
    if KH == 1 and KW == 1:
        patches = x[:, ::stride, ::stride, :][:, :Ho, :Wo, :]
        patches = patches.reshape(N * Ho * Wo, Cin)
    else:
        cols = []
        for i in range(KH):
            for j in range(KW):
                cols.append(x[:, i:i + (Ho - 1) * stride + 1:stride,
                              j:j + (Wo - 1) * stride + 1:stride, :])
        patches = jnp.concatenate(cols, axis=-1).reshape(
            N * Ho * Wo, KH * KW * Cin)
    wm = w.reshape(KH * KW * Cin, Cout)
    out = matmul_bias_act(patches, wm, b, activation=activation)
    return out.reshape(N, Ho, Wo, Cout)


def conv_transpose_single(x, filt, stride):
    """conv_transpose2d for 1-in/1-out channel bilinear upsampling filters."""
    N, H, W, C = x.shape
    k = filt.shape[0]
    Hd = (H - 1) * stride + 1
    Wd = (W - 1) * stride + 1
    xd = jnp.zeros((N, Hd, Wd, C), x.dtype).at[:, ::stride, ::stride, :].set(x)
    wf = filt[::-1, ::-1].reshape(k, k, 1, 1).astype(jnp.float32)
    return conv2d(xd, wf, None, stride=1, padding=k - 1, activation="linear")


def maxpool_2x2_ceil(x):
    N, H, W, C = x.shape
    Hp = -(-H // 2) * 2
    Wp = -(-W // 2) * 2
    xp = jnp.pad(x, ((0, 0), (0, Hp - H), (0, Wp - W), (0, 0)),
                 constant_values=-jnp.inf)
    return jnp.max(xp.reshape(N, Hp // 2, 2, Wp // 2, 2, C), axis=(2, 4))


def resize_bilinear_ac(x, out_h, out_w):
    """F.interpolate(mode='bilinear', align_corners=True) on NHWC."""
    N, H, W, C = x.shape
    x = x.astype(jnp.float32)
    if out_h == H and out_w == W:
        return x
    ys = jnp.linspace(0.0, float(H - 1), out_h)
    xs = jnp.linspace(0.0, float(W - 1), out_w)
    y0 = jnp.clip(jnp.floor(ys).astype(jnp.int32), 0, H - 1)
    y1 = jnp.clip(y0 + 1, 0, H - 1)
    x0 = jnp.clip(jnp.floor(xs).astype(jnp.int32), 0, W - 1)
    x1 = jnp.clip(x0 + 1, 0, W - 1)
    wy = (ys - y0.astype(jnp.float32))[None, :, None, None]
    wx = (xs - x0.astype(jnp.float32))[None, None, :, None]
    g = lambda yi, xi: jnp.take(jnp.take(x, yi, axis=1), xi, axis=2)
    top = g(y0, x0) * (1.0 - wx) + g(y0, x1) * wx
    bot = g(y1, x0) * (1.0 - wx) + g(y1, x1) * wx
    return top * (1.0 - wy) + bot * wy


# ----------------------------------------------------------------------------
# Pallas kernel 2: build_2Dcorr (disparity correlation cost volume)
# ----------------------------------------------------------------------------
def _corr_kernel(l_ref, r_ref, o_ref, *, max_disp, inv_c):
    # blocks: l/r (1, th, W, C)  ->  out (1, D, th, W)  (lane dim = W, dense)
    l = l_ref[0]                         # (th, W, C)
    r = r_ref[0]
    th, W, _ = l.shape
    for d in range(max_disp):            # static unroll, O(D) work total
        # corr[x] = mean_c l[:, x, :] * r[:, x - d, :]  for x >= d, else 0
        corr = jnp.sum(l[:, d:, :] * r[:, :W - d, :], axis=-1) * inv_c
        if d == 0:
            o_ref[0, d] = corr
        else:
            o_ref[0, d, :, :d] = jnp.zeros((th, d), jnp.float32)
            o_ref[0, d, :, d:] = corr


@functools.partial(jax.jit, static_argnames=("max_disp",))
def build_2d_corr(left, right, max_disp):
    B, H, W, C = left.shape
    th = H if H <= 128 else 128          # row-blocked grid (multiple of 8 / full)
    grid = (B, pl.cdiv(H, th))
    out = pl.pallas_call(
        functools.partial(_corr_kernel, max_disp=max_disp, inv_c=1.0 / C),
        out_shape=jax.ShapeDtypeStruct((B, max_disp, H, W), jnp.float32),
        grid_spec=pltpu.PrefetchScalarGridSpec(
            num_scalar_prefetch=0,
            grid=grid,
            in_specs=[pl.BlockSpec((1, th, W, C), lambda b, h: (b, h, 0, 0)),
                      pl.BlockSpec((1, th, W, C), lambda b, h: (b, h, 0, 0))],
            out_specs=pl.BlockSpec((1, max_disp, th, W),
                                   lambda b, h: (b, 0, h, 0)),
        ),
        compiler_params=pltpu.CompilerParams(
            dimension_semantics=("parallel", "parallel")),
    )(left.astype(jnp.float32), right.astype(jnp.float32))
    return jnp.transpose(out, (0, 2, 3, 1))   # NHWC cost volume (B, H, W, D)


# ----------------------------------------------------------------------------
# parameter initialization (deterministic, synthetic)
# ----------------------------------------------------------------------------
class KeyGen:
    def __init__(self, seed):
        self._key = jax.random.PRNGKey(seed)

    def __call__(self):
        self._key, sub = jax.random.split(self._key)
        return sub


def init_conv(key, kh, kw, cin, cout, bias=True):
    kw_, kb_ = jax.random.split(key)
    fan_in = kh * kw * cin
    w = jax.random.normal(kw_, (kh, kw, cin, cout), jnp.float32) * np.sqrt(2.0 / fan_in)
    b = (jax.random.normal(kb_, (cout,), jnp.float32) * 0.01) if bias else None
    return {"w": w, "b": b}


def init_bn(key, c):
    k1, k2 = jax.random.split(key)
    return {"gamma": 1.0 + 0.1 * jax.random.normal(k1, (c,), jnp.float32),
            "beta": 0.01 * jax.random.normal(k2, (c,), jnp.float32),
            "mean": jnp.zeros((c,), jnp.float32),
            "var": jnp.ones((c,), jnp.float32)}


def fold_bn(conv_p, bn_p, eps=1e-5):
    """Fold eval-mode BatchNorm into the conv's weight/bias (epilogue in kernel)."""
    scale = bn_p["gamma"] / jnp.sqrt(bn_p["var"] + eps)
    w = conv_p["w"] * scale[None, None, None, :]
    b0 = conv_p["b"] if conv_p["b"] is not None else jnp.zeros_like(scale)
    b = (b0 - bn_p["mean"]) * scale + bn_p["beta"]
    return w, b


def make_bilinear_filter(size):
    factor = (size + 1) // 2
    center = factor - 1 if size % 2 == 1 else factor - 0.5
    og = np.ogrid[:size, :size]
    filt = (1 - abs(og[0] - center) / factor) * (1 - abs(og[1] - center) / factor)
    return jnp.asarray(filt, jnp.float32)


_HED_CONVS = [
    ("conv1_1", 3, 64), ("conv1_2", 64, 64),
    ("conv2_1", 64, 128), ("conv2_2", 128, 128),
    ("conv3_1", 128, 256), ("conv3_2", 256, 256), ("conv3_3", 256, 256),
    ("conv4_1", 256, 512), ("conv4_2", 512, 512), ("conv4_3", 512, 512),
    ("conv5_1", 512, 512), ("conv5_2", 512, 512), ("conv5_3", 512, 512),
]
_HED_SCORES = [("score_dsn1", 64), ("score_dsn2", 128), ("score_dsn3", 256),
               ("score_dsn4", 512), ("score_dsn5", 512)]


def init_hed(kg):
    p = {}
    for name, cin, cout in _HED_CONVS:
        p[name] = init_conv(kg(), 3, 3, cin, cout, bias=True)
    for name, cin in _HED_SCORES:
        p[name] = init_conv(kg(), 1, 1, cin, 1, bias=True)
    p["score_final"] = init_conv(kg(), 1, 1, 5, 1, bias=True)
    p["weight_deconv2"] = make_bilinear_filter(4)
    p["weight_deconv3"] = make_bilinear_filter(8)
    p["weight_deconv4"] = make_bilinear_filter(16)
    p["weight_deconv5"] = make_bilinear_filter(32)
    return p


def init_basic_block(kg, cin, cout, stride):
    p = {"conv1": init_conv(kg(), 3, 3, cin, cout, bias=False),
         "bn1": init_bn(kg(), cout),
         "conv2": init_conv(kg(), 3, 3, cout, cout, bias=False),
         "bn2": init_bn(kg(), cout),
         "stride": stride}
    if stride != 1 or cin != cout:
        p["down_conv"] = init_conv(kg(), 1, 1, cin, cout, bias=False)
        p["down_bn"] = init_bn(kg(), cout)
    return p


def init_layer(kg, cin, cout, blocks, stride):
    layer = [init_basic_block(kg, cin, cout, stride)]
    for _ in range(blocks - 1):
        layer.append(init_basic_block(kg, cout, cout, 1))
    return layer


def init_decoder(kg, cin, cout):
    return {"conv": init_conv(kg(), 3, 3, cin, cout, bias=False),
            "bn": init_bn(kg(), cout)}


MAX_DISP = 32
FEA_SCALE = 4


def init_edgestereo_params(seed=42):
    kg = KeyGen(seed)
    inplanes = MAX_DISP // FEA_SCALE
    params = {
        "hed": init_hed(kg),
        "encoder1": init_layer(kg, inplanes, 128, 3, 1),
        "encoder2": init_layer(kg, 128, 256, 4, 2),
        "encoder3": init_layer(kg, 256, 512, 6, 2),
        "encoder4": init_layer(kg, 512, 1024, 3, 2),
        "decoder4": init_decoder(kg, 1024, 512),
        "decoder3": init_decoder(kg, 512, 256),
        "decoder2": init_decoder(kg, 256, 128),
        "decoder1": init_decoder(kg, 128, 128),
        "last_conv": [
            {"conv": init_conv(kg(), 3, 3, 128, 64, bias=False), "bn": init_bn(kg(), 64)},
            {"conv": init_conv(kg(), 3, 3, 64, 32, bias=False), "bn": init_bn(kg(), 32)},
            {"conv": init_conv(kg(), 3, 3, 32, 1, bias=True)},
        ],
    }
    return params


# ----------------------------------------------------------------------------
# HED forward
# ----------------------------------------------------------------------------
def prepare_aligned_crop():
    def map_inv(m):
        a, b = m
        return (1 / a, -b / a)

    def map_compose(m1, m2):
        a1, b1 = m1
        a2, b2 = m2
        return (a1 * a2, a1 * b2 + b1)

    def deconv_map(k, s, p):
        return (s, (k - 1) / 2 - p)

    def conv_map(k, s, p):
        return map_inv(deconv_map(k, s, p))

    pool_map = conv_map
    x_map = (1, 0)
    c11 = map_compose(conv_map(3, 1, 35), x_map)
    c12 = map_compose(conv_map(3, 1, 1), c11)
    p1 = map_compose(pool_map(2, 2, 0), c12)
    c21 = map_compose(conv_map(3, 1, 1), p1)
    c22 = map_compose(conv_map(3, 1, 1), c21)
    p2 = map_compose(pool_map(2, 2, 0), c22)
    c31 = map_compose(conv_map(3, 1, 1), p2)
    c32 = map_compose(conv_map(3, 1, 1), c31)
    c33 = map_compose(conv_map(3, 1, 1), c32)
    p3 = map_compose(pool_map(2, 2, 0), c33)
    c41 = map_compose(conv_map(3, 1, 1), p3)
    c42 = map_compose(conv_map(3, 1, 1), c41)
    c43 = map_compose(conv_map(3, 1, 1), c42)
    p4 = map_compose(pool_map(2, 2, 0), c43)
    c51 = map_compose(conv_map(3, 1, 1), p4)
    c52 = map_compose(conv_map(3, 1, 1), c51)
    c53 = map_compose(conv_map(3, 1, 1), c52)
    up2 = map_compose(deconv_map(4, 2, 0), c22)
    up3 = map_compose(deconv_map(8, 4, 0), c33)
    up4 = map_compose(deconv_map(16, 8, 0), c43)
    up5 = map_compose(deconv_map(32, 16, 0), c53)
    return (int(c12[1]), int(up2[1]), int(up3[1]), int(up4[1]), int(up5[1]))


def hed_forward(p, x):
    # x: (N, H, W, 3)
    H, W = x.shape[1], x.shape[2]
    m1, m2, m3, m4, m5 = prepare_aligned_crop()

    def c(name, inp, pad):
        return conv2d(inp, p[name]["w"], p[name]["b"], stride=1, padding=pad,
                      activation="relu")

    conv1_1 = c("conv1_1", x, 35)
    conv1_2 = c("conv1_2", conv1_1, 1)
    pool1 = maxpool_2x2_ceil(conv1_2)
    conv2_1 = c("conv2_1", pool1, 1)
    conv2_2 = c("conv2_2", conv2_1, 1)
    pool2 = maxpool_2x2_ceil(conv2_2)
    conv3_1 = c("conv3_1", pool2, 1)
    conv3_2 = c("conv3_2", conv3_1, 1)
    conv3_3 = c("conv3_3", conv3_2, 1)
    pool3 = maxpool_2x2_ceil(conv3_3)
    conv4_1 = c("conv4_1", pool3, 1)
    conv4_2 = c("conv4_2", conv4_1, 1)
    conv4_3 = c("conv4_3", conv4_2, 1)
    pool4 = maxpool_2x2_ceil(conv4_3)
    conv5_1 = c("conv5_1", pool4, 1)
    conv5_2 = c("conv5_2", conv5_1, 1)
    conv5_3 = c("conv5_3", conv5_2, 1)

    def score(name, inp):
        return conv2d(inp, p[name]["w"], p[name]["b"], stride=1, padding=0,
                      activation="linear")

    s1 = score("score_dsn1", conv1_2)
    s2 = score("score_dsn2", conv2_2)
    s3 = score("score_dsn3", conv3_3)
    s4 = score("score_dsn4", conv4_3)
    s5 = score("score_dsn5", conv5_3)

    u2 = conv_transpose_single(s2, p["weight_deconv2"], 2)
    u3 = conv_transpose_single(s3, p["weight_deconv3"], 4)
    u4 = conv_transpose_single(s4, p["weight_deconv4"], 8)
    u5 = conv_transpose_single(s5, p["weight_deconv5"], 16)

    crop1 = s1[:, m1:m1 + H, m1:m1 + W, :]
    crop2 = u2[:, m2:m2 + H, m2:m2 + W, :]
    crop3 = u3[:, m3:m3 + H, m3:m3 + W, :]
    crop4 = u4[:, m4:m4 + H, m4:m4 + W, :]
    crop5 = u5[:, m5:m5 + H, m5:m5 + W, :]

    fuse_cat = jnp.concatenate([crop1, crop2, crop3, crop4, crop5], axis=-1)
    fuse = conv2d(fuse_cat, p["score_final"]["w"], p["score_final"]["b"],
                  stride=1, padding=0, activation="linear")
    results = [s1, s2, s3, s4, s5, crop1, crop2, crop3, crop4, crop5, fuse]
    return [jax.nn.sigmoid(r) for r in results]


# ----------------------------------------------------------------------------
# encoder / decoder / head
# ----------------------------------------------------------------------------
def basic_block_fwd(p, x):
    stride = p["stride"]
    w1, b1 = fold_bn(p["conv1"], p["bn1"])
    out = conv2d(x, w1, b1, stride=stride, padding=1, activation="relu")
    w2, b2 = fold_bn(p["conv2"], p["bn2"])
    out = conv2d(out, w2, b2, stride=1, padding=1, activation="linear")
    if "down_conv" in p:
        wd, bd = fold_bn(p["down_conv"], p["down_bn"])
        identity = conv2d(x, wd, bd, stride=stride, padding=0, activation="linear")
    else:
        identity = x
    return jnp.maximum(out + identity, 0.0)


def layer_fwd(layer, x):
    for blk in layer:
        x = basic_block_fwd(blk, x)
    return x


def decoder_fwd(p, x):
    N, H, W, C = x.shape
    x = resize_bilinear_ac(x, 2 * H, 2 * W)
    w, b = fold_bn(p["conv"], p["bn"])
    return conv2d(x, w, b, stride=1, padding=1, activation="relu")


def last_conv_fwd(ps, x):
    w, b = fold_bn(ps[0]["conv"], ps[0]["bn"])
    x = conv2d(x, w, b, stride=1, padding=1, activation="relu")
    w, b = fold_bn(ps[1]["conv"], ps[1]["bn"])
    x = conv2d(x, w, b, stride=1, padding=1, activation="relu")
    x = conv2d(x, ps[2]["conv"]["w"], ps[2]["conv"]["b"], stride=1, padding=1,
               activation="linear")
    return x


# ----------------------------------------------------------------------------
# edgestereo forward
# ----------------------------------------------------------------------------
def edgestereo_forward(params, inputs):
    to_nhwc = lambda t: jnp.transpose(t, (0, 2, 3, 1)).astype(jnp.float32)
    left_img = to_nhwc(inputs["ref_img"])
    right_img = to_nhwc(inputs["tgt_img"])
    left_fea = to_nhwc(inputs["ref_feature"])
    right_fea = to_nhwc(inputs["tgt_feature"])

    left_edges = hed_forward(params["hed"], left_img)
    right_edges = hed_forward(params["hed"], right_img)

    left_cat_edge = jnp.concatenate(left_edges[5:], axis=-1)
    right_cat_edge = jnp.concatenate(right_edges[5:], axis=-1)

    h, w = left_fea.shape[1], left_fea.shape[2]
    left_cat_edge = resize_bilinear_ac(left_cat_edge, h, w)
    right_cat_edge = resize_bilinear_ac(right_cat_edge, h, w)
    left_fea = jnp.concatenate([left_fea, left_cat_edge], axis=-1)
    right_fea = jnp.concatenate([right_fea, right_cat_edge], axis=-1)

    cost_volume = build_2d_corr(left_fea, right_fea, MAX_DISP // FEA_SCALE)

    enc1 = layer_fwd(params["encoder1"], cost_volume)
    enc2 = layer_fwd(params["encoder2"], enc1)
    enc3 = layer_fwd(params["encoder3"], enc2)
    enc4 = layer_fwd(params["encoder4"], enc3)
    dec3 = decoder_fwd(params["decoder4"], enc4)
    dec2 = decoder_fwd(params["decoder3"], dec3)
    dec1 = decoder_fwd(params["decoder2"], dec2)
    output = decoder_fwd(params["decoder1"], dec1)
    disparity = last_conv_fwd(params["last_conv"], output)

    H, W = left_img.shape[1], left_img.shape[2]
    disparity = resize_bilinear_ac(disparity, H, W)
    disparity = jnp.clip(disparity, 0.0, float(MAX_DISP))
    disparity = disparity[..., 0]          # == squeeze(1) in NCHW
    edge = left_edges[-1][..., 0]          # == left_edges[-1].squeeze(1)
    return disparity, edge


# ----------------------------------------------------------------------------
if __name__ == "__main__":
    B = 2
    IMG_H = IMG_W = 32
    FEA_C = 26                         # ref/tgt feature channels (+6 edge maps -> 32)
    fh, fw = IMG_H // FEA_SCALE, IMG_W // FEA_SCALE

    key = jax.random.PRNGKey(0)
    k1, k2, k3, k4 = jax.random.split(key, 4)
    inputs = {
        "ref_img": jax.random.normal(k1, (B, 3, IMG_H, IMG_W), jnp.float32),
        "tgt_img": jax.random.normal(k2, (B, 3, IMG_H, IMG_W), jnp.float32),
        "ref_feature": jax.random.normal(k3, (B, FEA_C, fh, fw), jnp.float32),
        "tgt_feature": jax.random.normal(k4, (B, FEA_C, fh, fw), jnp.float32),
    }

    params = init_edgestereo_params(seed=42)

    disparity, edge = edgestereo_forward(params, inputs)
    disparity = jax.block_until_ready(disparity)
    edge = jax.block_until_ready(edge)

    assert disparity.shape == (B, IMG_H, IMG_W), disparity.shape
    assert edge.shape == (B, IMG_H, IMG_W), edge.shape
    assert bool(jnp.all(jnp.isfinite(disparity)))
    assert bool(jnp.all((edge >= 0.0) & (edge <= 1.0)))
    print("KERNEL_OK")
</pallas_src>

<mosaic_0001>
module attributes {stable_mosaic.version = 11 : i64} {
  func.func @_mm_fullk_kernel(%arg0: i32, %arg1: i32, %arg2: memref<256x32xbf16, #tpu.memory_space<vmem>>, %arg3: memref<32x64xbf16, #tpu.memory_space<vmem>>, %arg4: memref<1x64xf32, #tpu.memory_space<vmem>>, %arg5: memref<256x64xf32, #tpu.memory_space<vmem>>) attributes {dimension_semantics = [#tpu.dimension_semantics<parallel>, #tpu.dimension_semantics<parallel>], iteration_bounds = array<i64: 79, 1>, scalar_prefetch = 0 : i64, scratch_operands = 0 : i64, tpu.core_type = #tpu.core_type<tc>, window_params = [{transform_indices = @transform_0, window_bounds = array<i64: 256, 32>}, {transform_indices = @transform_1, window_bounds = array<i64: 32, 64>}, {transform_indices = @transform_2, window_bounds = array<i64: 1, 64>}, {transform_indices = @transform_3, window_bounds = array<i64: 256, 64>}]} {
    %c0 = arith.constant 0 : index
    %c0_0 = arith.constant 0 : index
    %0 = vector.load %arg2[%c0, %c0_0] : memref<256x32xbf16, #tpu.memory_space<vmem>>, vector<256x32xbf16>
    %c0_1 = arith.constant 0 : index
    %c0_2 = arith.constant 0 : index
    %1 = vector.load %arg3[%c0_1, %c0_2] : memref<32x64xbf16, #tpu.memory_space<vmem>>, vector<32x64xbf16>
    %cst = arith.constant dense<0.000000e+00> : vector<256x64xf32>
    %2 = tpu.matmul %0, %1, %cst {dimension_numbers = #tpu.dot_dimension_numbers<[1], [0], [0], [1], [0, 0, 1, 1], [], []>} : vector<256x32xbf16>, vector<32x64xbf16>, vector<256x64xf32> -> vector<256x64xf32>
    %c0_3 = arith.constant 0 : index
    %c0_4 = arith.constant 0 : index
    %3 = vector.load %arg4[%c0_3, %c0_4] : memref<1x64xf32, #tpu.memory_space<vmem>>, vector<1x64xf32>
    %4 = vector.broadcast %3 : vector<1x64xf32> to vector<256x64xf32>
    %5 = arith.addf %2, %4 : vector<256x64xf32>
    %cst_5 = arith.constant 0.000000e+00 : f32
    %6 = vector.broadcast %cst_5 : f32 to vector<256x64xf32>
    %7 = arith.maximumf %5, %6 : vector<256x64xf32>
    %c0_6 = arith.constant 0 : index
    %c0_7 = arith.constant 0 : index
    %8 = vector.load %arg5[%c0_6, %c0_7] : memref<256x64xf32, #tpu.memory_space<vmem>>, vector<256x64xf32>
    tpu.vector_store %arg5[%c0_6, %c0_7], %7 {strides = array<i32>} : memref<256x64xf32, #tpu.memory_space<vmem>>, vector<256x64xf32>,
    return
  }
  func.func @transform_0(%arg0: i32, %arg1: i32) -> (i32, i32) {
    %c0_i32 = arith.constant 0 : i32
    %c0_i32_0 = arith.constant 0 : i32
    return %arg0, %c0_i32 : i32, i32
  }
  func.func @transform_1(%arg0: i32, %arg1: i32) -> (i32, i32) {
    %c0_i32 = arith.constant 0 : i32
    %c0_i32_0 = arith.constant 0 : i32
    return %c0_i32, %arg1 : i32, i32
  }
  func.func @transform_2(%arg0: i32, %arg1: i32) -> (i32, i32) {
    %c0_i32 = arith.constant 0 : i32
    %c0_i32_0 = arith.constant 0 : i32
    return %c0_i32, %arg1 : i32, i32
  }
  func.func @transform_3(%arg0: i32, %arg1: i32) -> (i32, i32) {
    %c0_i32 = arith.constant 0 : i32
    return %arg0, %arg1 : i32, i32
  }
}

</mosaic_0001>

<llo_original>
// kernel: matmul_bias_act.1
$region0: #{matmul_bias_act.1}
  #allocation0 [shape = 'u32[]', space=smem, size = 0x4, offset = 0x4, fixed_abs, tag = 'smem constant byte address 0x4 - core index']
  #allocation1 [shape = 'u32[72,128]{1,0:T(1,128)}', space=vmem, size = 0x9000, scoped, tag = 'internal scratch']
  %s0 = inlined_call_operand.vmem [shape: bf16[20000,32], index: 0, kind: input, shape index: {}]
  %s1 = inlined_call_operand.vmem [shape: bf16[32,64], index: 1, kind: input, shape index: {}]
  %s2 = inlined_call_operand.vmem [shape: f32[1,64], index: 2, kind: input, shape index: {}]
  %s3 = inlined_call_operand.vmem [shape: f32[20000,64], index: 3, kind: output, shape index: {}]
  %s4 = sld [smem:[#allocation0]]
  $region93: #{matmul_bias_act.1} parent=0
    _
  %s6 = ssub.s32 1, %s4
  %s7 = scalar_select 0, %s6, %s4
  $region1: #{matmul_bias_act.1} parent=0
    #allocation2 [shape = 'u8[262144]{0}', space=vmem, size = 0x40000, scoped, tag = 'output window, operand 0']
    loop: start=0, step=1, limit=81
    $region2: #{matmul_bias_act.1} parent=1 // loop_pre_header
      _
    $region3: #{matmul_bias_act.1} parent=1 // loop_header
      %s9 = sphi 0, %s13
      %p10 = scmp.ge.s32.totalorder %s9, 81
      %s16 = sphi 0, %s28
      %s17 = sphi 0, %s24
      %s18 = sphi 0, %s16
      %s19 = sphi 0, %s17
      %s20 = sphi 0, %s18
      %s21 = sphi 0, %s19
      %s31 = sphi 0, %s33
      %s34 = sphi 0, %s31
      %s35 = sphi 0, %s34
      %s51 = sphi 0, %s35
      %s57 = sphi 0, %s59
      %s60 = sphi 0, %s57
      %s61 = sphi 0, %s60
      %s77 = sphi 0, %s61
      %s83 = sphi 0, %s85
      %s86 = sphi 0, %s83
      %s87 = sphi 0, %s86
      %s103 = sphi 0, %s87
      %s111 = sphi 0, %s113
      %s114 = sphi 0, %s111
      %s115 = sphi 0, %s114
      %s131 = sphi 0, %s115
    $region4: #{matmul_bias_act.1} parent=1 // loop_header_branch
      %12 = sbr.rel (%p10) target = $region8
    $region5: #{matmul_bias_act.1} parent=1 // loop_body
      %s14 = ssub.s32 %s9, 1
      %s15 = ssub.s32 %s9, 2
      %s22 = sadd.s32 1, %s17
      %p23 = scmp.ge.s32.totalorder %s22, 1
      %s24 = scalar_select %p23, 0, %s22
      %s25 = sadd.s32 1, %s16
      %s26 = scalar_select %p23, %s25, %s16
      %p27 = scmp.ge.s32.totalorder %s26, 79
      %s28 = scalar_select %p27, 0, %s26
      %s29 = ssub.s32 %s16, %s28
      %p30 = scmp.eq.s32.totalorder %s29, 0
      %s32 = sadd.s32 %s31, 1
      %s33 = scalar_select %p30, %s31, %s32
      %p36 = pneg %p30
      %p37 = scmp.eq.s32.totalorder %s9, 78
      %p38 = por %p36, %p37
      %p39 = scmp.ne.s32.totalorder %s31, %s34
      %p40 = scmp.eq.s32.totalorder %s9, 0
      %p41 = por %p39, %p40
      %p42 = scmp.ne.s32.totalorder %s31, %s34
      %p43 = scmp.eq.s32.totalorder %s14, 78
      %p44 = por %p42, %p43
      %p45 = scmp.ne.s32.totalorder %s34, %s35
      %p46 = scmp.eq.s32.totalorder %s14, 0
      %p47 = por %p45, %p46
      %p48 = scmp.ne.s32.totalorder %s34, %s35
      %p49 = scmp.eq.s32.totalorder %s15, 78
      %p50 = por %p48, %p49
      %p52 = scmp.ne.s32.totalorder %s35, %s51
      %p53 = scmp.eq.s32.totalorder %s15, 0
      %p54 = por %p52, %p53
      %s55 = ssub.s32 %s17, %s24
      %p56 = scmp.eq.s32.totalorder %s55, 0
      %s58 = sadd.s32 %s57, 1
      %s59 = scalar_select %p56, %s57, %s58
      %p62 = pneg %p56
      %p63 = scmp.eq.s32.totalorder %s9, 78
      %p64 = por %p62, %p63
      %p65 = scmp.ne.s32.totalorder %s57, %s60
      %p66 = scmp.eq.s32.totalorder %s9, 0
      %p67 = por %p65, %p66
      %p68 = scmp.ne.s32.totalorder %s57, %s60
      %p69 = scmp.eq.s32.totalorder %s14, 78
      %p70 = por %p68, %p69
      %p71 = scmp.ne.s32.totalorder %s60, %s61
      %p72 = scmp.eq.s32.totalorder %s14, 0
      %p73 = por %p71, %p72
      %p74 = scmp.ne.s32.totalorder %s60, %s61
      %p75 = scmp.eq.s32.totalorder %s15, 78
      %p76 = por %p74, %p75
      %p78 = scmp.ne.s32.totalorder %s61, %s77
      %p79 = scmp.eq.s32.totalorder %s15, 0
      %p80 = por %p78, %p79
      %s81 = ssub.s32 %s17, %s24
      %p82 = scmp.eq.s32.totalorder %s81, 0
      %s84 = sadd.s32 %s83, 1
      %s85 = scalar_select %p82, %s83, %s84
      %p88 = pneg %p82
      %p89 = scmp.eq.s32.totalorder %s9, 78
      %p90 = por %p88, %p89
      %p91 = scmp.ne.s32.totalorder %s83, %s86
      %p92 = scmp.eq.s32.totalorder %s9, 0
      %p93 = por %p91, %p92
      %p94 = scmp.ne.s32.totalorder %s83, %s86
      %p95 = scmp.eq.s32.totalorder %s14, 78
      %p96 = por %p94, %p95
      %p97 = scmp.ne.s32.totalorder %s86, %s87
      %p98 = scmp.eq.s32.totalorder %s14, 0
      %p99 = por %p97, %p98
      %p100 = scmp.ne.s32.totalorder %s86, %s87
      %p101 = scmp.eq.s32.totalorder %s15, 78
      %p102 = por %p100, %p101
      %p104 = scmp.ne.s32.totalorder %s87, %s103
      %p105 = scmp.eq.s32.totalorder %s15, 0
      %p106 = por %p104, %p105
      %s107 = ssub.s32 %s16, %s28
      %s108 = ssub.s32 %s17, %s24
      %s109 = sor.u32 %s107, %s108
      %p110 = scmp.eq.s32.totalorder %s109, 0
      %s112 = sadd.s32 %s111, 1
      %s113 = scalar_select %p110, %s111, %s112
      %p116 = pneg %p110
      %p117 = scmp.eq.s32.totalorder %s9, 78
      %p118 = por %p116, %p117
      %p119 = scmp.ne.s32.totalorder %s111, %s114
      %p120 = scmp.eq.s32.totalorder %s9, 0
      %p121 = por %p119, %p120
      %p122 = scmp.ne.s32.totalorder %s111, %s114
      %p123 = scmp.eq.s32.totalorder %s14, 78
      %p124 = por %p122, %p123
      %p125 = scmp.ne.s32.totalorder %s114, %s115
      %p126 = scmp.eq.s32.totalorder %s14, 0
      %p127 = por %p125, %p126
      %p128 = scmp.ne.s32.totalorder %s114, %s115
      %p129 = scmp.eq.s32.totalorder %s15, 78
      %p130 = por %p128, %p129
      %p132 = scmp.ne.s32.totalorder %s115, %s131
      %p133 = scmp.eq.s32.totalorder %s15, 0
      %p134 = por %p132, %p133
      %p135 = scmp.le.s32.totalorder 1, %s9
      %p136 = scmp.lt.s32.totalorder %s9, 80
      %p137 = pnand %p135, %p136
      %p138 = pneg %p137
      // Predicated region
      $region9: #{matmul_bias_act.1} parent=5 // pred_check
        _
      $region10: #{matmul_bias_act.1} parent=5 // pred_check_branch
        %140 = sbr.rel (%p137) target = $region12
      $region11: #{matmul_bias_act.1} parent=5 // pred_region
        %s141 = ssub.s32 %s9, 1
        // Predicated region
        $region13: #{matmul_bias_act.1} parent=11 // pred_check
          %p142 = pneg %p73
        $region14: #{matmul_bias_act.1} parent=11 // pred_check_branch
          %144 = sbr.rel (%p142) target = $region16
        $region15: #{matmul_bias_act.1} parent=11 // pred_region
          %p145 = scmp.lt.s32.totalorder %s19, 0
          %s146 = scalar_select %p145, %s19, 0
          %s147 = smul.addr %s146, 4
          %s148 = scalar_lea.vmem %s1, %s147
        $region16: #{matmul_bias_act.1} parent=11 // pred_fallthru
          _
        // Predicated region
        $region17: #{matmul_bias_act.1} parent=11 // pred_check
          %p149 = pneg %p99
        $region18: #{matmul_bias_act.1} parent=11 // pred_check_branch
          %151 = sbr.rel (%p149) target = $region20
        $region19: #{matmul_bias_act.1} parent=11 // pred_region
          %p152 = scmp.lt.s32.totalorder %s19, 0
          %s153 = scalar_select %p152, %s19, 0
          %s154 = scalar_lea.vmem %s2, %s153
        $region20: #{matmul_bias_act.1} parent=11 // pred_fallthru
          _
      $region12: #{matmul_bias_act.1} parent=5 // pred_fallthru
        _
      %p155 = scmp.lt.s32.totalorder %s9, 79
      // Predicated region
      $region21: #{matmul_bias_act.1} parent=5 // pred_check
        %p156 = pneg %p155
      $region22: #{matmul_bias_act.1} parent=5 // pred_check_branch
        %158 = sbr.rel (%p156) target = $region24
      $region23: #{matmul_bias_act.1} parent=5 // pred_region
        // Predicated region
        $region25: #{matmul_bias_act.1} parent=23 // pred_check
          %p159 = pneg %p41
        $region26: #{matmul_bias_act.1} parent=23 // pred_check_branch
          %161 = sbr.rel (%p159) target = $region28
        $region27: #{matmul_bias_act.1} parent=23 // pred_region
          %s162 = smul.u32 32, %s16
          %s163 = ssub.s32 2500, %s162
          %p164 = scmp.lt.s32.totalorder %s163, 32
          %s165 = scalar_select %p164, %s163, 32
          %s166 = smul.u32 4, %s165
          %p167 = scmp.lt.s32.totalorder %s162, 2499
          %s168 = scalar_select %p167, %s162, 2499
          %s169 = smul.addr %s168, 4
          %s170 = scalar_lea.vmem %s0, %s169
          %s171 = smul.u32 32, %s16
          %s172 = ssub.s32 2500, %s171
          %p173 = scmp.lt.s32.totalorder %s172, 32
          %s174 = scalar_select %p173, %s172, 32
          %s175 = smul.u32 4, %s174
        $region28: #{matmul_bias_act.1} parent=23 // pred_fallthru
          _
      $region24: #{matmul_bias_act.1} parent=5 // pred_fallthru
        _
      %p176 = scmp.le.s32.totalorder 1, %s9
      %p177 = scmp.lt.s32.totalorder %s9, 80
      %p178 = pnand %p176, %p177
      %p179 = pneg %p178
      // Predicated region
      $region29: #{matmul_bias_act.1} parent=5 // pred_check
        _
      $region30: #{matmul_bias_act.1} parent=5 // pred_check_branch
        %181 = sbr.rel (%p178) target = $region32
      $region31: #{matmul_bias_act.1} parent=5 // pred_region
        %s182 = ssub.s32 %s9, 1
        %s183 = smul.u32 32, %s18
        %s184 = ssub.s32 2500, %s183
        %p185 = scmp.lt.s32.totalorder %s184, 32
        %s186 = scalar_select %p185, %s184, 32
        %s187 = smul.u32 4, %s186
        %p188 = scmp.lt.s32.totalorder %s183, 2499
        %s189 = scalar_select %p188, %s183, 2499
        %s190 = smul.addr %s189, 4
        %s191 = scalar_lea.vmem %s0, %s190
        %p192 = pneg %p47
        %p193 = pneg %p44
        %p194 = scmp.lt.s32.totalorder %s19, 0
        %s195 = scalar_select %p194, %s19, 0
        %s196 = smul.addr %s195, 4
        %s197 = scalar_lea.vmem %s1, %s196
        %p198 = pneg %p73
        %p199 = pneg %p70
        %p200 = scmp.lt.s32.totalorder %s19, 0
        %s201 = scalar_select %p200, %s19, 0
        %s202 = scalar_lea.vmem %s2, %s201
        %p203 = pneg %p99
        %p204 = pneg %p96
        %p205 = pneg %p127
        %p206 = pneg %p124
        %s207 = sand.u32 %s114, 1
        %s208 = sand.u32 %s114, 1
        %s209 = smul.addr %s208, 256
        %s210 = scalar_lea.vmem [#allocation2], %s209
        %s211 = smul.u32 32, %s18
        %s212 = ssub.s32 2500, %s211
        %p213 = scmp.lt.s32.totalorder %s212, 32
        %s214 = scalar_select %p213, %s212, 32
        %s215 = smul.u32 4, %s214
        %p216 = scmp.lt.s32.totalorder %s211, 2499
        %s217 = scalar_select %p216, %s211, 2499
        %s218 = smul.addr %s217, 4
        %s219 = scalar_lea.vmem %s0, %s218
        %s220 = smul.u32 32, %s18
        %s221 = ssub.s32 2500, %s220
        %p222 = scmp.lt.s32.totalorder %s221, 32
        %s223 = scalar_select %p222, %s221, 32
        %s224 = smul.u32 4, %s223
        %p225 = scmp.lt.s32.totalorder %s19, 0
        %s226 = scalar_select %p225, %s19, 0
        %s227 = smul.addr %s226, 4
        %s228 = scalar_lea.vmem %s1, %s227
        %p229 = scmp.lt.s32.totalorder %s19, 0
        %s230 = scalar_select %p229, %s19, 0
        %s231 = scalar_lea.vmem %s2, %s230
        %s232 = smul.u32 32, %s18
        %s233 = ssub.s32 2500, %s232
        %p234 = scmp.lt.s32.totalorder %s233, 32
        %s235 = scalar_select %p234, %s233, 32
        %s236 = smul.u32 8, %s235
        %v238 = vld [vmem:[%s219] sm:$0xf]
        %v239 = vld [vmem:[%s219 + $0x4] sm:$0xf]
        %v240 = vld [vmem:[%s219 + $0x8] sm:$0xf]
        %v241 = vld [vmem:[%s219 + $0xc] sm:$0xf]
        %v242 = vld [vmem:[%s219 + $0x10] sm:$0xf]
        %v243 = vld [vmem:[%s219 + $0x14] sm:$0xf]
        %v244 = vld [vmem:[%s219 + $0x18] sm:$0xf]
        %v245 = vld [vmem:[%s219 + $0x1c] sm:$0xf]
        %v246 = vld [vmem:[%s219 + $0x20] sm:$0xf]
        %v247 = vld [vmem:[%s219 + $0x24] sm:$0xf]
        %v248 = vld [vmem:[%s219 + $0x28] sm:$0xf]
        %v249 = vld [vmem:[%s219 + $0x2c] sm:$0xf]
        %v250 = vld [vmem:[%s219 + $0x30] sm:$0xf]
        %v251 = vld [vmem:[%s219 + $0x34] sm:$0xf]
        %v252 = vld [vmem:[%s219 + $0x38] sm:$0xf]
        %v253 = vld [vmem:[%s219 + $0x3c] sm:$0xf]
        %v254 = vld [vmem:[%s219 + $0x40] sm:$0xf]
        %v255 = vld [vmem:[%s219 + $0x44] sm:$0xf]
        %v256 = vld [vmem:[%s219 + $0x48] sm:$0xf]
        %v257 = vld [vmem:[%s219 + $0x4c] sm:$0xf]
        %v258 = vld [vmem:[%s219 + $0x50] sm:$0xf]
        %v259 = vld [vmem:[%s219 + $0x54] sm:$0xf]
        %v260 = vld [vmem:[%s219 + $0x58] sm:$0xf]
        %v261 = vld [vmem:[%s219 + $0x5c] sm:$0xf]
        %v262 = vld [vmem:[%s219 + $0x60] sm:$0xf]
        %v263 = vld [vmem:[%s219 + $0x64] sm:$0xf]
        %v264 = vld [vmem:[%s219 + $0x68] sm:$0xf]
        %v265 = vld [vmem:[%s219 + $0x6c] sm:$0xf]
        %v266 = vld [vmem:[%s219 + $0x70] sm:$0xf]
        %v267 = vld [vmem:[%s219 + $0x74] sm:$0xf]
        %v268 = vld [vmem:[%s219 + $0x78] sm:$0xf]
        %v269 = vld [vmem:[%s219 + $0x7c] sm:$0xf]
        %v270 = vld [vmem:[%s228] sm:$0xf]
        %v271 = vld [vmem:[%s228 + $0x4] sm:$0xf]
        %v272 = vld [vmem:[%s228 + $0x8] sm:$0xf]
        %v273 = vld [vmem:[%s228 + $0xc] sm:$0xf]
        %v274 = vld [vmem:[%s231] sm:$0x1]
        %v276 = vperm.slane %v274, 0
        %v310 = vunpack.c.l.b16 %v238
        %v311 = vunpack.c.l.b16 %v239
        %v312 = vunpack.c.l.b16 %v240
        %v313 = vunpack.c.l.b16 %v241
        %v314 = vunpack.c.l.b16 %v242
        %v315 = vunpack.c.l.b16 %v243
        %v316 = vunpack.c.l.b16 %v244
        %v317 = vunpack.c.l.b16 %v245
        %v318 = vunpack.c.l.b16 %v246
        %v319 = vunpack.c.l.b16 %v247
        %v320 = vunpack.c.l.b16 %v248
        %v321 = vunpack.c.l.b16 %v249
        %v322 = vunpack.c.l.b16 %v250
        %v323 = vunpack.c.l.b16 %v251
        %v324 = vunpack.c.l.b16 %v252
        %v325 = vunpack.c.l.b16 %v253
        %v326 = vunpack.c.l.b16 %v254
        %v327 = vunpack.c.l.b16 %v255
        %v328 = vunpack.c.l.b16 %v256
        %v329 = vunpack.c.l.b16 %v257
        %v330 = vunpack.c.l.b16 %v258
        %v331 = vunpack.c.l.b16 %v259
        %v332 = vunpack.c.l.b16 %v260
        %v333 = vunpack.c.l.b16 %v261
        %v334 = vunpack.c.l.b16 %v262
        %v335 = vunpack.c.l.b16 %v263
        %v336 = vunpack.c.l.b16 %v264
        %v337 = vunpack.c.l.b16 %v265
        %v338 = vunpack.c.l.b16 %v266
        %v339 = vunpack.c.l.b16 %v267
        %v340 = vunpack.c.l.b16 %v268
        %v341 = vunpack.c.l.b16 %v269
        %v342 = vpack.c.b16 %v311, %v310
        %v343 = vpack.c.b16 %v313, %v312
        %v344 = vpack.c.b16 %v315, %v314
        %v345 = vpack.c.b16 %v317, %v316
        %v346 = vpack.c.b16 %v319, %v318
        %v347 = vpack.c.b16 %v321, %v320
        %v348 = vpack.c.b16 %v323, %v322
        %v349 = vpack.c.b16 %v325, %v324
        %v350 = vpack.c.b16 %v327, %v326
        %v351 = vpack.c.b16 %v329, %v328
        %v352 = vpack.c.b16 %v331, %v330
        %v353 = vpack.c.b16 %v333, %v332
        %v354 = vpack.c.b16 %v335, %v334
        %v355 = vpack.c.b16 %v337, %v336
        %v356 = vpack.c.b16 %v339, %v338
        %v357 = vpack.c.b16 %v341, %v340
        %v362 = vunpack.c.l.b16 %v270
        %v363 = vunpack.c.l.b16 %v271
        %v364 = vunpack.c.l.b16 %v272
        %v365 = vunpack.c.l.b16 %v273
        %v366 = vpack.c.b16 %v363, %v362
        %v367 = vpack.c.b16 %v365, %v364
        %vm370 = vcmask 261120
        %v372 = vsel %vm370, %v342, 0
        %v375 = vsel %vm370, %v343, 0
        %v378 = vsel %vm370, %v344, 0
        %v381 = vsel %vm370, %v345, 0
        %v384 = vsel %vm370, %v346, 0
        %v387 = vsel %vm370, %v347, 0
        %v390 = vsel %vm370, %v348, 0
        %v393 = vsel %vm370, %v349, 0
        %v396 = vsel %vm370, %v350, 0
        %v399 = vsel %vm370, %v351, 0
        %v402 = vsel %vm370, %v352, 0
        %v405 = vsel %vm370, %v353, 0
        %v408 = vsel %vm370, %v354, 0
        %v411 = vsel %vm370, %v355, 0
        %v414 = vsel %vm370, %v356, 0
        %v417 = vsel %vm370, %v357, 0
        %419 = vmatpush.bf16.msra.mxu0 0
        %420 = vmatpush.bf16.msra.mxu0 0
        %421 = vmatpush.bf16.msra.mxu0 0
        %422 = vmatpush.bf16.msra.mxu0 0
        %423 = vmatpush.bf16.msra.mxu0 0
        %424 = vmatpush.bf16.msra.mxu0 0
        %425 = vmatpush.bf16.msra.mxu0 %v367
        %426 = vmatpush.bf16.msra.mxu0 %v366
        %427 = vmatmul.bf16.gmra.mxu0 %v372
        %v428 = vpop.f32.mrf.mxu0
        %v429 = vadd.f32 %v276, %v428
        %v430 = vpop.f32.mrf.mxu0
        %v431 = vadd.f32 %v276, %v430
        %432 = vmatmul.bf16.gmra.mxu0 %v375
        %v433 = vpop.f32.mrf.mxu0
        %v434 = vadd.f32 %v276, %v433
        %v435 = vpop.f32.mrf.mxu0
        %v436 = vadd.f32 %v276, %v435
        %437 = vmatmul.bf16.gmra.mxu0 %v378
        %v438 = vpop.f32.mrf.mxu0
        %v439 = vadd.f32 %v276, %v438
        %v440 = vpop.f32.mrf.mxu0
        %v441 = vadd.f32 %v276, %v440
        %442 = vmatmul.bf16.gmra.mxu0 %v381
        %v443 = vpop.f32.mrf.mxu0
        %v444 = vadd.f32 %v276, %v443
        %v445 = vpop.f32.mrf.mxu0
        %v446 = vadd.f32 %v276, %v445
        %447 = vmatmul.bf16.gmra.mxu0 %v384
        %v448 = vpop.f32.mrf.mxu0
        %v449 = vadd.f32 %v276, %v448
        %v450 = vpop.f32.mrf.mxu0
        %v451 = vadd.f32 %v276, %v450
        %452 = vmatmul.bf16.gmra.mxu0 %v387
        %v453 = vpop.f32.mrf.mxu0
        %v454 = vadd.f32 %v276, %v453
        %v455 = vpop.f32.mrf.mxu0
        %v456 = vadd.f32 %v276, %v455
        %457 = vmatmul.bf16.gmra.mxu0 %v390
        %v458 = vpop.f32.mrf.mxu0
        %v459 = vadd.f32 %v276, %v458
        %v460 = vpop.f32.mrf.mxu0
        %v461 = vadd.f32 %v276, %v460
        %462 = vmatmul.bf16.gmra.mxu0 %v393
        %v463 = vpop.f32.mrf.mxu0
        %v464 = vadd.f32 %v276, %v463
        %v465 = vpop.f32.mrf.mxu0
        %v466 = vadd.f32 %v276, %v465
        %467 = vmatmul.bf16.gmra.mxu0 %v396
        %v468 = vpop.f32.mrf.mxu0
        %v469 = vadd.f32 %v276, %v468
        %v470 = vpop.f32.mrf.mxu0
        %v471 = vadd.f32 %v276, %v470
        %472 = vmatmul.bf16.gmra.mxu0 %v399
        %v473 = vpop.f32.mrf.mxu0
        %v474 = vadd.f32 %v276, %v473
        %v475 = vpop.f32.mrf.mxu0
        %v476 = vadd.f32 %v276, %v475
        %477 = vmatmul.bf16.gmra.mxu0 %v402
        %v478 = vpop.f32.mrf.mxu0
        %v479 = vadd.f32 %v276, %v478
        %v480 = vpop.f32.mrf.mxu0
        %v481 = vadd.f32 %v276, %v480
        %482 = vmatmul.bf16.gmra.mxu0 %v405
        %v483 = vpop.f32.mrf.mxu0
        %v484 = vadd.f32 %v276, %v483
        %v485 = vpop.f32.mrf.mxu0
        %v486 = vadd.f32 %v276, %v485
        %487 = vmatmul.bf16.gmra.mxu0 %v408
        %v488 = vpop.f32.mrf.mxu0
        %v489 = vadd.f32 %v276, %v488
        %v490 = vpop.f32.mrf.mxu0
        %v491 = vadd.f32 %v276, %v490
        %492 = vmatmul.bf16.gmra.mxu0 %v411
        %v493 = vpop.f32.mrf.mxu0
        %v494 = vadd.f32 %v276, %v493
        %v495 = vpop.f32.mrf.mxu0
        %v496 = vadd.f32 %v276, %v495
        %497 = vmatmul.bf16.gmra.mxu0 %v414
        %v498 = vpop.f32.mrf.mxu0
        %v499 = vadd.f32 %v276, %v498
        %v500 = vpop.f32.mrf.mxu0
        %v501 = vadd.f32 %v276, %v500
        %502 = vmatmul.bf16.gmra.mxu0 %v417
        %v503 = vpop.f32.mrf.mxu0
        %v504 = vadd.f32 %v276, %v503
        %v505 = vpop.f32.mrf.mxu0
        %v506 = vadd.f32 %v276, %v505
        %507 = vdwg.mxu0
        %v508 = vmax.f32 %v429, 0.0
        %v509 = vmax.f32 %v431, 0.0
        %v510 = vmax.f32 %v434, 0.0
        %v511 = vmax.f32 %v436, 0.0
        %v512 = vmax.f32 %v439, 0.0
        %v513 = vmax.f32 %v441, 0.0
        %v514 = vmax.f32 %v444, 0.0
        %v515 = vmax.f32 %v446, 0.0
        %v516 = vmax.f32 %v449, 0.0
        %v517 = vmax.f32 %v451, 0.0
        %v518 = vmax.f32 %v454, 0.0
        %v519 = vmax.f32 %v456, 0.0
        %v520 = vmax.f32 %v459, 0.0
        %v521 = vmax.f32 %v461, 0.0
        %v522 = vmax.f32 %v464, 0.0
        %v523 = vmax.f32 %v466, 0.0
        %v524 = vmax.f32 %v469, 0.0
        %v525 = vmax.f32 %v471, 0.0
        %v526 = vmax.f32 %v474, 0.0
        %v527 = vmax.f32 %v476, 0.0
        %v528 = vmax.f32 %v479, 0.0
        %v529 = vmax.f32 %v481, 0.0
        %v530 = vmax.f32 %v484, 0.0
        %v531 = vmax.f32 %v486, 0.0
        %v532 = vmax.f32 %v489, 0.0
        %v533 = vmax.f32 %v491, 0.0
        %v534 = vmax.f32 %v494, 0.0
        %v535 = vmax.f32 %v496, 0.0
        %v536 = vmax.f32 %v499, 0.0
        %v537 = vmax.f32 %v501, 0.0
        %v538 = vmax.f32 %v504, 0.0
        %v539 = vmax.f32 %v506, 0.0
        %vm540 = vcmask 523264
        %541 = vst.msk [vmem:[%s210] sm:$0xff] %vm540, %v508
        %542 = vst.msk [vmem:[%s210 + $0x8] sm:$0xff] %vm540, %v509
        %543 = vst.msk [vmem:[%s210 + $0x10] sm:$0xff] %vm540, %v510
        %544 = vst.msk [vmem:[%s210 + $0x18] sm:$0xff] %vm540, %v511
        %545 = vst.msk [vmem:[%s210 + $0x20] sm:$0xff] %vm540, %v512
        %546 = vst.msk [vmem:[%s210 + $0x28] sm:$0xff] %vm540, %v513
        %547 = vst.msk [vmem:[%s210 + $0x30] sm:$0xff] %vm540, %v514
        %548 = vst.msk [vmem:[%s210 + $0x38] sm:$0xff] %vm540, %v515
        %549 = vst.msk [vmem:[%s210 + $0x40] sm:$0xff] %vm540, %v516
        %550 = vst.msk [vmem:[%s210 + $0x48] sm:$0xff] %vm540, %v517
        %551 = vst.msk [vmem:[%s210 + $0x50] sm:$0xff] %vm540, %v518
        %552 = vst.msk [vmem:[%s210 + $0x58] sm:$0xff] %vm540, %v519
        %553 = vst.msk [vmem:[%s210 + $0x60] sm:$0xff] %vm540, %v520
        %554 = vst.msk [vmem:[%s210 + $0x68] sm:$0xff] %vm540, %v521
        %555 = vst.msk [vmem:[%s210 + $0x70] sm:$0xff] %vm540, %v522
        %556 = vst.msk [vmem:[%s210 + $0x78] sm:$0xff] %vm540, %v523
        %557 = vst.msk [vmem:[%s210 + $0x80] sm:$0xff] %vm540, %v524
        %558 = vst.msk [vmem:[%s210 + $0x88] sm:$0xff] %vm540, %v525
        %559 = vst.msk [vmem:[%s210 + $0x90] sm:$0xff] %vm540, %v526
        %560 = vst.msk [vmem:[%s210 + $0x98] sm:$0xff] %vm540, %v527
        %561 = vst.msk [vmem:[%s210 + $0xa0] sm:$0xff] %vm540, %v528
        %562 = vst.msk [vmem:[%s210 + $0xa8] sm:$0xff] %vm540, %v529
        %563 = vst.msk [vmem:[%s210 + $0xb0] sm:$0xff] %vm540, %v530
        %564 = vst.msk [vmem:[%s210 + $0xb8] sm:$0xff] %vm540, %v531
        %565 = vst.msk [vmem:[%s210 + $0xc0] sm:$0xff] %vm540, %v532
        %566 = vst.msk [vmem:[%s210 + $0xc8] sm:$0xff] %vm540, %v533
        %567 = vst.msk [vmem:[%s210 + $0xd0] sm:$0xff] %vm540, %v534
        %568 = vst.msk [vmem:[%s210 + $0xd8] sm:$0xff] %vm540, %v535
        %569 = vst.msk [vmem:[%s210 + $0xe0] sm:$0xff] %vm540, %v536
        %570 = vst.msk [vmem:[%s210 + $0xe8] sm:$0xff] %vm540, %v537
        %571 = vst.msk [vmem:[%s210 + $0xf0] sm:$0xff] %vm540, %v538
        %572 = vst.msk [vmem:[%s210 + $0xf8] sm:$0xff] %vm540, %v539
        %s573 = sand.u32 %s114, 1
        %s574 = sand.u32 %s114, 1
        %s575 = smul.addr %s574, 256
        %s576 = scalar_lea.vmem [#allocation2], %s575
        // Predicated region
        $region33: #{matmul_bias_act.1} parent=31 // pred_check
          %p577 = pneg %p124
        $region34: #{matmul_bias_act.1} parent=31 // pred_check_branch
          %579 = sbr.rel (%p577) target = $region36
        $region35: #{matmul_bias_act.1} parent=31 // pred_region
          %s580 = smul.u32 32, %s18
          %s581 = ssub.s32 2500, %s580
          %p582 = scmp.lt.s32.totalorder %s581, 32
          %s583 = scalar_select %p582, %s581, 32
          %s584 = smul.u32 8, %s583
          %p585 = scmp.ne.s32.totalorder 0, %s584
          %s586 = sadd.s32 %s19, %s580
          %s587 = smul.addr %s586, 8
          %s588 = scalar_lea.vmem %s3, %s587
          // Predicated region
          $region37: #{matmul_bias_act.1} parent=35 // pred_check
            %p589 = pneg %p585
          $region38: #{matmul_bias_act.1} parent=35 // pred_check_branch
            %591 = sbr.rel (%p589) target = $region40
          $region39: #{matmul_bias_act.1} parent=35 // pred_region
            // Predicated region
            $region41: #{matmul_bias_act.1} parent=39 // pred_check
              _
            $region42: #{matmul_bias_act.1} parent=39 // pred_check_branch
              %593 = sbr.rel (0) target = $region44
            $region43: #{matmul_bias_act.1} parent=39 // pred_region
              // Predicated region
              $region63: #{matmul_bias_act.1} parent=43 // pred_check
                _
              $region64: #{matmul_bias_act.1} parent=43 // pred_check_branch
                %705 = sbr.rel (0) target = $region66
              $region65: #{matmul_bias_act.1} parent=43 // pred_region
                %s706 = sshrl.u32 %s583, 5
                // While loop
                $region67: #{matmul_bias_act.1} parent=65 // loop_pre_header
                  _
                $region68: #{matmul_bias_act.1} parent=65 // loop_header
                  %s708 = sphi 0, %s710
                  %p709 = scmp.ge.s32.totalorder %s708, %s706
                  %s713 = sphi 0, %s782
                  %s714 = sphi %s576, %s785
                  %s715 = sphi %s588, %s786
                $region69: #{matmul_bias_act.1} parent=65 // loop_header_branch
                  %712 = sbr.rel (%p709) target = $region73
                $region70: #{matmul_bias_act.1} parent=65 // loop_body
                  %v716 = vld [vmem:[%s714] sm:$0xff]
                  %717 = vst [vmem:[%s715] sm:$0xff] %v716
                  %v718 = vld [vmem:[%s714 + $0x8] sm:$0xff]
                  %719 = vst [vmem:[%s715 + $0x8] sm:$0xff] %v718
                  %v720 = vld [vmem:[%s714 + $0x10] sm:$0xff]
                  %721 = vst [vmem:[%s715 + $0x10] sm:$0xff] %v720
                  %v722 = vld [vmem:[%s714 + $0x18] sm:$0xff]
                  %723 = vst [vmem:[%s715 + $0x18] sm:$0xff] %v722
                  %v724 = vld [vmem:[%s714 + $0x20] sm:$0xff]
                  %725 = vst [vmem:[%s715 + $0x20] sm:$0xff] %v724
                  %v726 = vld [vmem:[%s714 + $0x28] sm:$0xff]
                  %727 = vst [vmem:[%s715 + $0x28] sm:$0xff] %v726
                  %v728 = vld [vmem:[%s714 + $0x30] sm:$0xff]
                  %729 = vst [vmem:[%s715 + $0x30] sm:$0xff] %v728
                  %v730 = vld [vmem:[%s714 + $0x38] sm:$0xff]
                  %731 = vst [vmem:[%s715 + $0x38] sm:$0xff] %v730
                  %v732 = vld [vmem:[%s714 + $0x40] sm:$0xff]
                  %733 = vst [vmem:[%s715 + $0x40] sm:$0xff] %v732
                  %v734 = vld [vmem:[%s714 + $0x48] sm:$0xff]
                  %735 = vst [vmem:[%s715 + $0x48] sm:$0xff] %v734
                  %v736 = vld [vmem:[%s714 + $0x50] sm:$0xff]
                  %737 = vst [vmem:[%s715 + $0x50] sm:$0xff] %v736
                  %v738 = vld [vmem:[%s714 + $0x58] sm:$0xff]
                  %739 = vst [vmem:[%s715 + $0x58] sm:$0xff] %v738
                  %v740 = vld [vmem:[%s714 + $0x60] sm:$0xff]
                  %741 = vst [vmem:[%s715 + $0x60] sm:$0xff] %v740
                  %v742 = vld [vmem:[%s714 + $0x68] sm:$0xff]
                  %743 = vst [vmem:[%s715 + $0x68] sm:$0xff] %v742
                  %v744 = vld [vmem:[%s714 + $0x70] sm:$0xff]
                  %745 = vst [vmem:[%s715 + $0x70] sm:$0xff] %v744
                  %v746 = vld [vmem:[%s714 + $0x78] sm:$0xff]
                  %747 = vst [vmem:[%s715 + $0x78] sm:$0xff] %v746
                  %v748 = vld [vmem:[%s714 + $0x80] sm:$0xff]
                  %749 = vst [vmem:[%s715 + $0x80] sm:$0xff] %v748
                  %v750 = vld [vmem:[%s714 + $0x88] sm:$0xff]
                  %751 = vst [vmem:[%s715 + $0x88] sm:$0xff] %v750
                  %v752 = vld [vmem:[%s714 + $0x90] sm:$0xff]
                  %753 = vst [vmem:[%s715 + $0x90] sm:$0xff] %v752
                  %v754 = vld [vmem:[%s714 + $0x98] sm:$0xff]
                  %755 = vst [vmem:[%s715 + $0x98] sm:$0xff] %v754
                  %v756 = vld [vmem:[%s714 + $0xa0] sm:$0xff]
                  %757 = vst [vmem:[%s715 + $0xa0] sm:$0xff] %v756
                  %v758 = vld [vmem:[%s714 + $0xa8] sm:$0xff]
                  %759 = vst [vmem:[%s715 + $0xa8] sm:$0xff] %v758
                  %v760 = vld [vmem:[%s714 + $0xb0] sm:$0xff]
                  %761 = vst [vmem:[%s715 + $0xb0] sm:$0xff] %v760
                  %v762 = vld [vmem:[%s714 + $0xb8] sm:$0xff]
                  %763 = vst [vmem:[%s715 + $0xb8] sm:$0xff] %v762
                  %v764 = vld [vmem:[%s714 + $0xc0] sm:$0xff]
                  %765 = vst [vmem:[%s715 + $0xc0] sm:$0xff] %v764
                  %v766 = vld [vmem:[%s714 + $0xc8] sm:$0xff]
                  %767 = vst [vmem:[%s715 + $0xc8] sm:$0xff] %v766
                  %v768 = vld [vmem:[%s714 + $0xd0] sm:$0xff]
                  %769 = vst [vmem:[%s715 + $0xd0] sm:$0xff] %v768
                  %v770 = vld [vmem:[%s714 + $0xd8] sm:$0xff]
                  %771 = vst [vmem:[%s715 + $0xd8] sm:$0xff] %v770
                  %v772 = vld [vmem:[%s714 + $0xe0] sm:$0xff]
                  %773 = vst [vmem:[%s715 + $0xe0] sm:$0xff] %v772
                  %v774 = vld [vmem:[%s714 + $0xe8] sm:$0xff]
                  %775 = vst [vmem:[%s715 + $0xe8] sm:$0xff] %v774
                  %v776 = vld [vmem:[%s714 + $0xf0] sm:$0xff]
                  %777 = vst [vmem:[%s715 + $0xf0] sm:$0xff] %v776
                  %v778 = vld [vmem:[%s714 + $0xf8] sm:$0xff]
                  %779 = vst [vmem:[%s715 + $0xf8] sm:$0xff] %v778
                  %s780 = sadd.s32 1, %s713
                  %p781 = scmp.ge.s32.totalorder %s780, %s706
                  %s782 = scalar_select %p781, 0, %s780
                  %s783 = smul.u32 %s782, 256
                  %s784 = smul.u32 %s782, 256
                  %s785 = scalar_lea.vmem %s576, %s783 [#allocation2]
                  %s786 = scalar_lea.vmem %s588, %s784
                $region71: #{matmul_bias_act.1} parent=65 // loop_footer
                  %s710 = sadd.s32 %s708, 1
                $region72: #{matmul_bias_act.1} parent=65 // loop_footer_branch
                  %707 = sbr.rel target = $region68
                $region73: #{matmul_bias_act.1} parent=65 // loop_exit
                  _
                %s787 = sshrl.u32 %s583, 5
                %s788 = sand.u32 %s583, 31
                %s789 = smul.u32 %s787, 32
                %s790 = smul.u32 8, %s789
                %s791 = scalar_lea.vmem %s576, %s790 [#allocation2]
                %s792 = smul.u32 8, %s789
                %s793 = scalar_lea.vmem %s588, %s792
                // While loop
                $region74: #{matmul_bias_act.1} parent=65 // loop_pre_header
                  _
                $region75: #{matmul_bias_act.1} parent=65 // loop_header
                  %s795 = sphi 0, %s797
                  %p796 = scmp.ge.s32.totalorder %s795, %s788
                  %s800 = sphi 0, %s807
                  %s801 = sphi %s791, %s810
                  %s802 = sphi %s793, %s811
                $region76: #{matmul_bias_act.1} parent=65 // loop_header_branch
                  %799 = sbr.rel (%p796) target = $region80
                $region77: #{matmul_bias_act.1} parent=65 // loop_body
                  %v803 = vld [vmem:[%s801] sm:$0xff]
                  %804 = vst [vmem:[%s802] sm:$0xff] %v803
                  %s805 = sadd.s32 1, %s800
                  %p806 = scmp.ge.s32.totalorder %s805, %s788
                  %s807 = scalar_select %p806, 0, %s805
                  %s808 = smul.u32 %s807, 8
                  %s809 = smul.u32 %s807, 8
                  %s810 = scalar_lea.vmem %s791, %s808 [#allocation2]
                  %s811 = scalar_lea.vmem %s793, %s809
                $region78: #{matmul_bias_act.1} parent=65 // loop_footer
                  %s797 = sadd.s32 %s795, 1
                $region79: #{matmul_bias_act.1} parent=65 // loop_footer_branch
                  %794 = sbr.rel target = $region75
                $region80: #{matmul_bias_act.1} parent=65 // loop_exit
                  _
              $region66: #{matmul_bias_act.1} parent=43 // pred_fallthru
                _
              // Predicated region
              $region81: #{matmul_bias_act.1} parent=43 // pred_check
                _
              $region82: #{matmul_bias_act.1} parent=43 // pred_check_branch
                %813 = sbr.rel target = $region84
              $region83: #{matmul_bias_act.1} parent=43 // pred_region
                _
              $region84: #{matmul_bias_act.1} parent=43 // pred_fallthru
                _
            $region44: #{matmul_bias_act.1} parent=39 // pred_fallthru
              _
            // Predicated region
            $region45: #{matmul_bias_act.1} parent=39 // pred_check
              _
            $region46: #{matmul_bias_act.1} parent=39 // pred_check_branch
              %595 = sbr.rel target = $region48
            $region47: #{matmul_bias_act.1} parent=39 // pred_region
              %s597 = ssub.s32 256, 1
              %s598 = sshrl.u32 %s583, 5
              // While loop
              $region49: #{matmul_bias_act.1} parent=47 // loop_pre_header
                _
              $region50: #{matmul_bias_act.1} parent=47 // loop_header
                %s600 = sphi 0, %s602
                %p601 = scmp.ge.s32.totalorder %s600, %s598
                %s605 = sphi 0, %s674
                %s606 = sphi %s576, %s677
                %s607 = sphi %s588, %s678
              $region51: #{matmul_bias_act.1} parent=47 // loop_header_branch
                %604 = sbr.rel (%p601) target = $region55
              $region52: #{matmul_bias_act.1} parent=47 // loop_body
                %v608 = vld [vmem:[%s606] sm:%s597]
                %609 = vst [vmem:[%s607] sm:%s597] %v608
                %v610 = vld [vmem:[%s606 + $0x8] sm:%s597]
                %611 = vst [vmem:[%s607 + $0x8] sm:%s597] %v610
                %v612 = vld [vmem:[%s606 + $0x10] sm:%s597]
                %613 = vst [vmem:[%s607 + $0x10] sm:%s597] %v612
                %v614 = vld [vmem:[%s606 + $0x18] sm:%s597]
                %615 = vst [vmem:[%s607 + $0x18] sm:%s597] %v614
                %v616 = vld [vmem:[%s606 + $0x20] sm:%s597]
                %617 = vst [vmem:[%s607 + $0x20] sm:%s597] %v616
                %v618 = vld [vmem:[%s606 + $0x28] sm:%s597]
                %619 = vst [vmem:[%s607 + $0x28] sm:%s597] %v618
                %v620 = vld [vmem:[%s606 + $0x30] sm:%s597]
                %621 = vst [vmem:[%s607 + $0x30] sm:%s597] %v620
                %v622 = vld [vmem:[%s606 + $0x38] sm:%s597]
                %623 = vst [vmem:[%s607 + $0x38] sm:%s597] %v622
                %v624 = vld [vmem:[%s606 + $0x40] sm:%s597]
                %625 = vst [vmem:[%s607 + $0x40] sm:%s597] %v624
                %v626 = vld [vmem:[%s606 + $0x48] sm:%s597]
                %627 = vst [vmem:[%s607 + $0x48] sm:%s597] %v626
                %v628 = vld [vmem:[%s606 + $0x50] sm:%s597]
                %629 = vst [vmem:[%s607 + $0x50] sm:%s597] %v628
                %v630 = vld [vmem:[%s606 + $0x58] sm:%s597]
                %631 = vst [vmem:[%s607 + $0x58] sm:%s597] %v630
                %v632 = vld [vmem:[%s606 + $0x60] sm:%s597]
                %633 = vst [vmem:[%s607 + $0x60] sm:%s597] %v632
                %v634 = vld [vmem:[%s606 + $0x68] sm:%s597]
                %635 = vst [vmem:[%s607 + $0x68] sm:%s597] %v634
                %v636 = vld [vmem:[%s606 + $0x70] sm:%s597]
                %637 = vst [vmem:[%s607 + $0x70] sm:%s597] %v636
                %v638 = vld [vmem:[%s606 + $0x78] sm:%s597]
                %639 = vst [vmem:[%s607 + $0x78] sm:%s597] %v638
                %v640 = vld [vmem:[%s606 + $0x80] sm:%s597]
                %641 = vst [vmem:[%s607 + $0x80] sm:%s597] %v640
                %v642 = vld [vmem:[%s606 + $0x88] sm:%s597]
                %643 = vst [vmem:[%s607 + $0x88] sm:%s597] %v642
                %v644 = vld [vmem:[%s606 + $0x90] sm:%s597]
                %645 = vst [vmem:[%s607 + $0x90] sm:%s597] %v644
                %v646 = vld [vmem:[%s606 + $0x98] sm:%s597]
                %647 = vst [vmem:[%s607 + $0x98] sm:%s597] %v646
                %v648 = vld [vmem:[%s606 + $0xa0] sm:%s597]
                %649 = vst [vmem:[%s607 + $0xa0] sm:%s597] %v648
                %v650 = vld [vmem:[%s606 + $0xa8] sm:%s597]
                %651 = vst [vmem:[%s607 + $0xa8] sm:%s597] %v650
                %v652 = vld [vmem:[%s606 + $0xb0] sm:%s597]
                %653 = vst [vmem:[%s607 + $0xb0] sm:%s597] %v652
                %v654 = vld [vmem:[%s606 + $0xb8] sm:%s597]
                %655 = vst [vmem:[%s607 + $0xb8] sm:%s597] %v654
                %v656 = vld [vmem:[%s606 + $0xc0] sm:%s597]
                %657 = vst [vmem:[%s607 + $0xc0] sm:%s597] %v656
                %v658 = vld [vmem:[%s606 + $0xc8] sm:%s597]
                %659 = vst [vmem:[%s607 + $0xc8] sm:%s597] %v658
                %v660 = vld [vmem:[%s606 + $0xd0] sm:%s597]
                %661 = vst [vmem:[%s607 + $0xd0] sm:%s597] %v660
                %v662 = vld [vmem:[%s606 + $0xd8] sm:%s597]
                %663 = vst [vmem:[%s607 + $0xd8] sm:%s597] %v662
                %v664 = vld [vmem:[%s606 + $0xe0] sm:%s597]
                %665 = vst [vmem:[%s607 + $0xe0] sm:%s597] %v664
                %v666 = vld [vmem:[%s606 + $0xe8] sm:%s597]
                %667 = vst [vmem:[%s607 + $0xe8] sm:%s597] %v666
                %v668 = vld [vmem:[%s606 + $0xf0] sm:%s597]
                %669 = vst [vmem:[%s607 + $0xf0] sm:%s597] %v668
                %v670 = vld [vmem:[%s606 + $0xf8] sm:%s597]
                %671 = vst [vmem:[%s607 + $0xf8] sm:%s597] %v670
                %s672 = sadd.s32 1, %s605
                %p673 = scmp.ge.s32.totalorder %s672, %s598
                %s674 = scalar_select %p673, 0, %s672
                %s675 = smul.u32 %s674, 256
                %s676 = smul.u32 %s674, 256
                %s677 = scalar_lea.vmem %s576, %s675 [#allocation2]
                %s678 = scalar_lea.vmem %s588, %s676
              $region53: #{matmul_bias_act.1} parent=47 // loop_footer
                %s602 = sadd.s32 %s600, 1
              $region54: #{matmul_bias_act.1} parent=47 // loop_footer_branch
                %599 = sbr.rel target = $region50
              $region55: #{matmul_bias_act.1} parent=47 // loop_exit
                _
              %s679 = sshrl.u32 %s583, 5
              %s680 = sand.u32 %s583, 31
              %s681 = smul.u32 %s679, 32
              %s682 = smul.u32 8, %s681
              %s683 = scalar_lea.vmem %s576, %s682 [#allocation2]
              %s684 = smul.u32 8, %s681
              %s685 = scalar_lea.vmem %s588, %s684
              // While loop
              $region56: #{matmul_bias_act.1} parent=47 // loop_pre_header
                _
              $region57: #{matmul_bias_act.1} parent=47 // loop_header
                %s687 = sphi 0, %s689
                %p688 = scmp.ge.s32.totalorder %s687, %s680
                %s692 = sphi 0, %s699
                %s693 = sphi %s683, %s702
                %s694 = sphi %s685, %s703
              $region58: #{matmul_bias_act.1} parent=47 // loop_header_branch
                %691 = sbr.rel (%p688) target = $region62
              $region59: #{matmul_bias_act.1} parent=47 // loop_body
                %v695 = vld [vmem:[%s693] sm:%s597]
                %696 = vst [vmem:[%s694] sm:%s597] %v695
                %s697 = sadd.s32 1, %s692
                %p698 = scmp.ge.s32.totalorder %s697, %s680
                %s699 = scalar_select %p698, 0, %s697
                %s700 = smul.u32 %s699, 8
                %s701 = smul.u32 %s699, 8
                %s702 = scalar_lea.vmem %s683, %s700 [#allocation2]
                %s703 = scalar_lea.vmem %s685, %s701
              $region60: #{matmul_bias_act.1} parent=47 // loop_footer
                %s689 = sadd.s32 %s687, 1
              $region61: #{matmul_bias_act.1} parent=47 // loop_footer_branch
                %686 = sbr.rel target = $region57
              $region62: #{matmul_bias_act.1} parent=47 // loop_exit
                _
            $region48: #{matmul_bias_act.1} parent=39 // pred_fallthru
              _
          $region40: #{matmul_bias_act.1} parent=35 // pred_fallthru
            _
          %814 = vnop
        $region36: #{matmul_bias_act.1} parent=31 // pred_fallthru
          _
      $region32: #{matmul_bias_act.1} parent=5 // pred_fallthru
        _
      %p815 = scmp.le.s32.totalorder 2, %s9
      // Predicated region
      $region85: #{matmul_bias_act.1} parent=5 // pred_check
        %p816 = pneg %p815
      $region86: #{matmul_bias_act.1} parent=5 // pred_check_branch
        %818 = sbr.rel (%p816) target = $region88
      $region87: #{matmul_bias_act.1} parent=5 // pred_region
        %s819 = ssub.s32 %s9, 2
        // Predicated region
        $region89: #{matmul_bias_act.1} parent=87 // pred_check
          %p820 = pneg %p130
        $region90: #{matmul_bias_act.1} parent=87 // pred_check_branch
          %822 = sbr.rel (%p820) target = $region92
        $region91: #{matmul_bias_act.1} parent=87 // pred_region
          %s823 = sand.u32 %s115, 1
          %s824 = sand.u32 %s115, 1
          %s825 = smul.addr %s824, 256
          %s826 = scalar_lea.vmem [#allocation2], %s825
        $region92: #{matmul_bias_act.1} parent=87 // pred_fallthru
          _
      $region88: #{matmul_bias_act.1} parent=5 // pred_fallthru
        _
    $region6: #{matmul_bias_act.1} parent=1 // loop_footer
      %s13 = sadd.s32 1, %s9
    $region7: #{matmul_bias_act.1} parent=1 // loop_footer_branch
      %8 = sbr.rel target = $region3
    $region8: #{matmul_bias_act.1} parent=1 // loop_exit
      _

</llo_original>
